<compile_context>
chip_gen: v5e
topology: v5e:2x2
jax: 0.10.0
libtpu: 0.0.40
codegen_flags: <defaults>
</compile_context>

<pallas_src>
import jax
import jax.numpy as jnp
from jax.experimental import pallas as pl
from jax.experimental.pallas import tpu as pltpu


def _round_up(x, m):
    return ((x + m - 1) // m) * m


def autoencoder_kernel(
    x_ref, ub_ref,
    gw_ref, gb_ref,
    i1w_ref, i1b_ref,
    i2w_ref, i2b_ref,
    i3w_ref, i3b_ref,
    i4w_ref, i4b_ref,
    hw_ref, hb_ref,
    out_ref,
):
    f32 = jnp.float32

    def linear(x, w_ref, b_ref):
        return jnp.dot(x, w_ref[...], preferred_element_type=f32) + b_ref[...]

    def sigmoid(x):
        # exp -> EUP, approximate reciprocal -> EUP: keeps the VALU free.
        return pl.reciprocal(1.0 + jnp.exp(-x), approx=True)

    x = x_ref[...] + ub_ref[...]                       # inputs + user_bias
    inner = jnp.tanh(linear(x, gw_ref, gb_ref))        # g  -> tanh
    h1 = linear(inner, i1w_ref, i1b_ref)               # i1
    h2 = sigmoid(linear(h1, i2w_ref, i2b_ref))         # i2 -> sigmoid
    h3 = linear(h2, i3w_ref, i3b_ref)                  # i3
    h4 = linear(h3, i4w_ref, i4b_ref)                  # i4
    outer = linear(h4, hw_ref, hb_ref)                 # h
    out_ref[...] = sigmoid(outer).astype(out_ref.dtype)


def autoencoder_forward(inputs, user_bias, params, *, block_batch=512):
    """inputs, user_bias: (batch, num_question) f32.
    params: dict name -> (W_transposed (in,out), bias (out,))."""
    batch, nq = inputs.shape
    k = params["g"][0].shape[1]
    l = params["i1"][0].shape[1]
    m = params["i2"][0].shape[1]

    # Batch tile: multiple of 8 sublanes, clamped for small batches.
    tb = min(block_batch, _round_up(batch, 8))
    tb = _round_up(tb, 8)
    padded_batch = _round_up(batch, tb)
    if padded_batch != batch:
        pad = padded_batch - batch
        inputs = jnp.pad(inputs, ((0, pad), (0, 0)))
        user_bias = jnp.pad(user_bias, ((0, pad), (0, 0)))

    grid = (padded_batch // tb,)

    # Activation tiles march over the batch; weights/biases stay resident.
    act_spec = pl.BlockSpec((tb, nq), lambda i: (i, 0))

    def const_spec(shape):
        return pl.BlockSpec(shape, lambda i: (0, 0))

    flat_args = [inputs, user_bias]
    in_specs = [act_spec, act_spec]
    weight_bytes = 0
    for name in ("g", "i1", "i2", "i3", "i4", "h"):
        wt, b = params[name]
        b2 = b.reshape(1, -1)
        flat_args += [wt, b2]
        in_specs += [const_spec(wt.shape), const_spec(b2.shape)]
        weight_bytes += (wt.size + b2.size) * wt.dtype.itemsize

    flops = 2 * padded_batch * (nq * k + k * l + l * m + m * l + l * k + k * nq)
    transcendentals = padded_batch * (k + m + nq)        # tanh + 2 sigmoids
    bytes_accessed = 3 * padded_batch * nq * 4 + weight_bytes

    out = pl.pallas_call(
        autoencoder_kernel,
        grid=grid,
        out_shape=jax.ShapeDtypeStruct((padded_batch, nq), jnp.float32),
        in_specs=in_specs,
        out_specs=act_spec,
        compiler_params=pltpu.CompilerParams(
            dimension_semantics=("parallel",)),
        cost_estimate=pl.CostEstimate(
            flops=flops,
            transcendentals=transcendentals,
            bytes_accessed=bytes_accessed),
    )(*flat_args)

    return out[:batch]


def init_linear(key, in_features, out_features):
    """Deterministic PyTorch-style init; weight stored transposed (in, out)."""
    kw, kb = jax.random.split(key)
    bound = 1.0 / jnp.sqrt(float(in_features))
    wt = jax.random.uniform(
        kw, (in_features, out_features), jnp.float32, -bound, bound)
    b = jax.random.uniform(kb, (out_features,), jnp.float32, -bound, bound)
    return wt, b


def reference_forward(inputs, user_bias, params):
    def lin(x, p):
        wt, b = p
        return x @ wt + b
    x = inputs + user_bias
    inner = jnp.tanh(lin(x, params["g"]))
    h1 = lin(inner, params["i1"])
    h2 = jax.nn.sigmoid(lin(h1, params["i2"]))
    h3 = lin(h2, params["i3"])
    h4 = lin(h3, params["i4"])
    return jax.nn.sigmoid(lin(h4, params["h"]))


if __name__ == "__main__":
    # Small shapes consistent with the module's forward.
    batch, num_question, k, l, m = 8, 128, 64, 32, 16

    key = jax.random.PRNGKey(0)
    keys = jax.random.split(key, 10)

    params = {
        "g": init_linear(keys[0], num_question, k),
        "i1": init_linear(keys[1], k, l),
        "i2": init_linear(keys[2], l, m),
        "i3": init_linear(keys[3], m, l),
        "i4": init_linear(keys[4], l, k),
        "h": init_linear(keys[5], k, num_question),
    }

    inputs = jax.random.normal(keys[6], (batch, num_question), jnp.float32)
    user_bias = jax.random.normal(keys[7], (batch, num_question), jnp.float32)

    out = autoencoder_forward(inputs, user_bias, params)
    out = jax.block_until_ready(out)

    ref = reference_forward(inputs, user_bias, params)
    assert out.shape == (batch, num_question)
    # approx=True reciprocal in the sigmoid trades a few ULPs for EUP offload.
    assert jnp.allclose(out, ref, atol=2e-3, rtol=2e-3), float(
        jnp.max(jnp.abs(out - ref)))

    # Exercise the padded-tail / multi-tile path (batch not a multiple of tile).
    b2 = 20
    inputs2 = jax.random.normal(keys[8], (b2, num_question), jnp.float32)
    ubias2 = jax.random.normal(keys[9], (b2, num_question), jnp.float32)
    out2 = jax.block_until_ready(
        autoencoder_forward(inputs2, ubias2, params, block_batch=8))
    ref2 = reference_forward(inputs2, ubias2, params)
    assert out2.shape == (b2, num_question)
    assert jnp.allclose(out2, ref2, atol=2e-3, rtol=2e-3)

    print("KERNEL_OK")
</pallas_src>

<mosaic_0001>
module attributes {stable_mosaic.version = 11 : i64} {
  func.func @autoencoder_kernel(%arg0: i32, %arg1: memref<8x128xf32, #tpu.memory_space<vmem>>, %arg2: memref<8x128xf32, #tpu.memory_space<vmem>>, %arg3: memref<128x64xf32, #tpu.memory_space<vmem>>, %arg4: memref<1x64xf32, #tpu.memory_space<vmem>>, %arg5: memref<64x32xf32, #tpu.memory_space<vmem>>, %arg6: memref<1x32xf32, #tpu.memory_space<vmem>>, %arg7: memref<32x16xf32, #tpu.memory_space<vmem>>, %arg8: memref<1x16xf32, #tpu.memory_space<vmem>>, %arg9: memref<16x32xf32, #tpu.memory_space<vmem>>, %arg10: memref<1x32xf32, #tpu.memory_space<vmem>>, %arg11: memref<32x64xf32, #tpu.memory_space<vmem>>, %arg12: memref<1x64xf32, #tpu.memory_space<vmem>>, %arg13: memref<64x128xf32, #tpu.memory_space<vmem>>, %arg14: memref<1x128xf32, #tpu.memory_space<vmem>>, %arg15: memref<8x128xf32, #tpu.memory_space<vmem>>) attributes {dimension_semantics = [#tpu.dimension_semantics<parallel>], iteration_bounds = array<i64: 1>, scalar_prefetch = 0 : i64, scratch_operands = 0 : i64, tpu.core_type = #tpu.core_type<tc>, window_params = [{transform_indices = @transform_0, window_bounds = array<i64: 8, 128>}, {transform_indices = @transform_1, window_bounds = array<i64: 8, 128>}, {pipeline_mode = #tpu.pipeline_mode<synchronous>, transform_indices = @transform_2, window_bounds = array<i64: 128, 64>}, {pipeline_mode = #tpu.pipeline_mode<synchronous>, transform_indices = @transform_3, window_bounds = array<i64: 1, 64>}, {pipeline_mode = #tpu.pipeline_mode<synchronous>, transform_indices = @transform_4, window_bounds = array<i64: 64, 32>}, {pipeline_mode = #tpu.pipeline_mode<synchronous>, transform_indices = @transform_5, window_bounds = array<i64: 1, 32>}, {pipeline_mode = #tpu.pipeline_mode<synchronous>, transform_indices = @transform_6, window_bounds = array<i64: 32, 16>}, {pipeline_mode = #tpu.pipeline_mode<synchronous>, transform_indices = @transform_7, window_bounds = array<i64: 1, 16>}, {pipeline_mode = #tpu.pipeline_mode<synchronous>, transform_indices = @transform_8, window_bounds = array<i64: 16, 32>}, {pipeline_mode = #tpu.pipeline_mode<synchronous>, transform_indices = @transform_9, window_bounds = array<i64: 1, 32>}, {pipeline_mode = #tpu.pipeline_mode<synchronous>, transform_indices = @transform_10, window_bounds = array<i64: 32, 64>}, {pipeline_mode = #tpu.pipeline_mode<synchronous>, transform_indices = @transform_11, window_bounds = array<i64: 1, 64>}, {pipeline_mode = #tpu.pipeline_mode<synchronous>, transform_indices = @transform_12, window_bounds = array<i64: 64, 128>}, {pipeline_mode = #tpu.pipeline_mode<synchronous>, transform_indices = @transform_13, window_bounds = array<i64: 1, 128>}, {transform_indices = @transform_14, window_bounds = array<i64: 8, 128>}]} {
    %c0 = arith.constant 0 : index
    %c0_0 = arith.constant 0 : index
    %0 = vector.load %arg1[%c0, %c0_0] : memref<8x128xf32, #tpu.memory_space<vmem>>, vector<8x128xf32>
    %c0_1 = arith.constant 0 : index
    %c0_2 = arith.constant 0 : index
    %1 = vector.load %arg2[%c0_1, %c0_2] : memref<8x128xf32, #tpu.memory_space<vmem>>, vector<8x128xf32>
    %2 = arith.addf %0, %1 : vector<8x128xf32>
    %c0_3 = arith.constant 0 : index
    %c0_4 = arith.constant 0 : index
    %3 = vector.load %arg3[%c0_3, %c0_4] : memref<128x64xf32, #tpu.memory_space<vmem>>, vector<128x64xf32>
    %cst = arith.constant dense<0.000000e+00> : vector<8x64xf32>
    %4 = tpu.matmul %2, %3, %cst {dimension_numbers = #tpu.dot_dimension_numbers<[1], [0], [0], [1], [0, 0, 1, 1], [], []>} : vector<8x128xf32>, vector<128x64xf32>, vector<8x64xf32> -> vector<8x64xf32>
    %c0_5 = arith.constant 0 : index
    %c0_6 = arith.constant 0 : index
    %5 = vector.load %arg4[%c0_5, %c0_6] : memref<1x64xf32, #tpu.memory_space<vmem>>, vector<1x64xf32>
    %6 = vector.broadcast %5 : vector<1x64xf32> to vector<8x64xf32>
    %7 = arith.addf %4, %6 : vector<8x64xf32>
    %8 = math.tanh %7 : vector<8x64xf32>
    %c0_7 = arith.constant 0 : index
    %c0_8 = arith.constant 0 : index
    %9 = vector.load %arg5[%c0_7, %c0_8] : memref<64x32xf32, #tpu.memory_space<vmem>>, vector<64x32xf32>
    %cst_9 = arith.constant dense<0.000000e+00> : vector<8x32xf32>
    %10 = tpu.matmul %8, %9, %cst_9 {dimension_numbers = #tpu.dot_dimension_numbers<[1], [0], [0], [1], [0, 0, 1, 1], [], []>} : vector<8x64xf32>, vector<64x32xf32>, vector<8x32xf32> -> vector<8x32xf32>
    %c0_10 = arith.constant 0 : index
    %c0_11 = arith.constant 0 : index
    %11 = vector.load %arg6[%c0_10, %c0_11] : memref<1x32xf32, #tpu.memory_space<vmem>>, vector<1x32xf32>
    %12 = vector.broadcast %11 : vector<1x32xf32> to vector<8x32xf32>
    %13 = arith.addf %10, %12 : vector<8x32xf32>
    %c0_12 = arith.constant 0 : index
    %c0_13 = arith.constant 0 : index
    %14 = vector.load %arg7[%c0_12, %c0_13] : memref<32x16xf32, #tpu.memory_space<vmem>>, vector<32x16xf32>
    %cst_14 = arith.constant dense<0.000000e+00> : vector<8x16xf32>
    %15 = tpu.matmul %13, %14, %cst_14 {dimension_numbers = #tpu.dot_dimension_numbers<[1], [0], [0], [1], [0, 0, 1, 1], [], []>} : vector<8x32xf32>, vector<32x16xf32>, vector<8x16xf32> -> vector<8x16xf32>
    %c0_15 = arith.constant 0 : index
    %c0_16 = arith.constant 0 : index
    %16 = vector.load %arg8[%c0_15, %c0_16] : memref<1x16xf32, #tpu.memory_space<vmem>>, vector<1x16xf32>
    %17 = vector.broadcast %16 : vector<1x16xf32> to vector<8x16xf32>
    %18 = arith.addf %15, %17 : vector<8x16xf32>
    %cst_17 = arith.constant 0.000000e+00 : f32
    %19 = vector.broadcast %cst_17 : f32 to vector<8x16xf32>
    %20 = arith.subf %19, %18 : vector<8x16xf32>
    %21 = math.exp %20 : vector<8x16xf32>
    %cst_18 = arith.constant 1.000000e+00 : f32
    %22 = vector.broadcast %cst_18 : f32 to vector<8x16xf32>
    %23 = arith.addf %22, %21 : vector<8x16xf32>
    %24 = tpu.reciprocal %23 {approx = true} : vector<8x16xf32> -> vector<8x16xf32>
    %c0_19 = arith.constant 0 : index
    %c0_20 = arith.constant 0 : index
    %25 = vector.load %arg9[%c0_19, %c0_20] : memref<16x32xf32, #tpu.memory_space<vmem>>, vector<16x32xf32>
    %cst_21 = arith.constant dense<0.000000e+00> : vector<8x32xf32>
    %26 = tpu.matmul %24, %25, %cst_21 {dimension_numbers = #tpu.dot_dimension_numbers<[1], [0], [0], [1], [0, 0, 1, 1], [], []>} : vector<8x16xf32>, vector<16x32xf32>, vector<8x32xf32> -> vector<8x32xf32>
    %c0_22 = arith.constant 0 : index
    %c0_23 = arith.constant 0 : index
    %27 = vector.load %arg10[%c0_22, %c0_23] : memref<1x32xf32, #tpu.memory_space<vmem>>, vector<1x32xf32>
    %28 = vector.broadcast %27 : vector<1x32xf32> to vector<8x32xf32>
    %29 = arith.addf %26, %28 : vector<8x32xf32>
    %c0_24 = arith.constant 0 : index
    %c0_25 = arith.constant 0 : index
    %30 = vector.load %arg11[%c0_24, %c0_25] : memref<32x64xf32, #tpu.memory_space<vmem>>, vector<32x64xf32>
    %cst_26 = arith.constant dense<0.000000e+00> : vector<8x64xf32>
    %31 = tpu.matmul %29, %30, %cst_26 {dimension_numbers = #tpu.dot_dimension_numbers<[1], [0], [0], [1], [0, 0, 1, 1], [], []>} : vector<8x32xf32>, vector<32x64xf32>, vector<8x64xf32> -> vector<8x64xf32>
    %c0_27 = arith.constant 0 : index
    %c0_28 = arith.constant 0 : index
    %32 = vector.load %arg12[%c0_27, %c0_28] : memref<1x64xf32, #tpu.memory_space<vmem>>, vector<1x64xf32>
    %33 = vector.broadcast %32 : vector<1x64xf32> to vector<8x64xf32>
    %34 = arith.addf %31, %33 : vector<8x64xf32>
    %c0_29 = arith.constant 0 : index
    %c0_30 = arith.constant 0 : index
    %35 = vector.load %arg13[%c0_29, %c0_30] : memref<64x128xf32, #tpu.memory_space<vmem>>, vector<64x128xf32>
    %cst_31 = arith.constant dense<0.000000e+00> : vector<8x128xf32>
    %36 = tpu.matmul %34, %35, %cst_31 {dimension_numbers = #tpu.dot_dimension_numbers<[1], [0], [0], [1], [0, 0, 1, 1], [], []>} : vector<8x64xf32>, vector<64x128xf32>, vector<8x128xf32> -> vector<8x128xf32>
    %c0_32 = arith.constant 0 : index
    %c0_33 = arith.constant 0 : index
    %37 = vector.load %arg14[%c0_32, %c0_33] : memref<1x128xf32, #tpu.memory_space<vmem>>, vector<1x128xf32>
    %38 = vector.broadcast %37 : vector<1x128xf32> to vector<8x128xf32>
    %39 = arith.addf %36, %38 : vector<8x128xf32>
    %cst_34 = arith.constant 0.000000e+00 : f32
    %40 = vector.broadcast %cst_34 : f32 to vector<8x128xf32>
    %41 = arith.subf %40, %39 : vector<8x128xf32>
    %42 = math.exp %41 : vector<8x128xf32>
    %cst_35 = arith.constant 1.000000e+00 : f32
    %43 = vector.broadcast %cst_35 : f32 to vector<8x128xf32>
    %44 = arith.addf %43, %42 : vector<8x128xf32>
    %45 = tpu.reciprocal %44 {approx = true} : vector<8x128xf32> -> vector<8x128xf32>
    %c0_36 = arith.constant 0 : index
    %c0_37 = arith.constant 0 : index
    %46 = vector.load %arg15[%c0_36, %c0_37] : memref<8x128xf32, #tpu.memory_space<vmem>>, vector<8x128xf32>
    tpu.vector_store %arg15[%c0_36, %c0_37], %45 {strides = array<i32>} : memref<8x128xf32, #tpu.memory_space<vmem>>, vector<8x128xf32>,
    return
  }
  func.func @transform_0(%arg0: i32) -> (i32, i32) {
    %c0_i32 = arith.constant 0 : i32
    %c0_i32_0 = arith.constant 0 : i32
    return %arg0, %c0_i32 : i32, i32
  }
  func.func @transform_1(%arg0: i32) -> (i32, i32) {
    %c0_i32 = arith.constant 0 : i32
    %c0_i32_0 = arith.constant 0 : i32
    return %arg0, %c0_i32 : i32, i32
  }
  func.func @transform_2(%arg0: i32) -> (i32, i32) {
    %c0_i32 = arith.constant 0 : i32
    %c0_i32_0 = arith.constant 0 : i32
    %c0_i32_1 = arith.constant 0 : i32
    return %c0_i32, %c0_i32_0 : i32, i32
  }
  func.func @transform_3(%arg0: i32) -> (i32, i32) {
    %c0_i32 = arith.constant 0 : i32
    %c0_i32_0 = arith.constant 0 : i32
    %c0_i32_1 = arith.constant 0 : i32
    return %c0_i32, %c0_i32_0 : i32, i32
  }
  func.func @transform_4(%arg0: i32) -> (i32, i32) {
    %c0_i32 = arith.constant 0 : i32
    %c0_i32_0 = arith.constant 0 : i32
    %c0_i32_1 = arith.constant 0 : i32
    return %c0_i32, %c0_i32_0 : i32, i32
  }
  func.func @transform_5(%arg0: i32) -> (i32, i32) {
    %c0_i32 = arith.constant 0 : i32
    %c0_i32_0 = arith.constant 0 : i32
    %c0_i32_1 = arith.constant 0 : i32
    return %c0_i32, %c0_i32_0 : i32, i32
  }
  func.func @transform_6(%arg0: i32) -> (i32, i32) {
    %c0_i32 = arith.constant 0 : i32
    %c0_i32_0 = arith.constant 0 : i32
    %c0_i32_1 = arith.constant 0 : i32
    return %c0_i32, %c0_i32_0 : i32, i32
  }
  func.func @transform_7(%arg0: i32) -> (i32, i32) {
    %c0_i32 = arith.constant 0 : i32
    %c0_i32_0 = arith.constant 0 : i32
    %c0_i32_1 = arith.constant 0 : i32
    return %c0_i32, %c0_i32_0 : i32, i32
  }
  func.func @transform_8(%arg0: i32) -> (i32, i32) {
    %c0_i32 = arith.constant 0 : i32
    %c0_i32_0 = arith.constant 0 : i32
    %c0_i32_1 = arith.constant 0 : i32
    return %c0_i32, %c0_i32_0 : i32, i32
  }
  func.func @transform_9(%arg0: i32) -> (i32, i32) {
    %c0_i32 = arith.constant 0 : i32
    %c0_i32_0 = arith.constant 0 : i32
    %c0_i32_1 = arith.constant 0 : i32
    return %c0_i32, %c0_i32_0 : i32, i32
  }
  func.func @transform_10(%arg0: i32) -> (i32, i32) {
    %c0_i32 = arith.constant 0 : i32
    %c0_i32_0 = arith.constant 0 : i32
    %c0_i32_1 = arith.constant 0 : i32
    return %c0_i32, %c0_i32_0 : i32, i32
  }
  func.func @transform_11(%arg0: i32) -> (i32, i32) {
    %c0_i32 = arith.constant 0 : i32
    %c0_i32_0 = arith.constant 0 : i32
    %c0_i32_1 = arith.constant 0 : i32
    return %c0_i32, %c0_i32_0 : i32, i32
  }
  func.func @transform_12(%arg0: i32) -> (i32, i32) {
    %c0_i32 = arith.constant 0 : i32
    %c0_i32_0 = arith.constant 0 : i32
    %c0_i32_1 = arith.constant 0 : i32
    return %c0_i32, %c0_i32_0 : i32, i32
  }
  func.func @transform_13(%arg0: i32) -> (i32, i32) {
    %c0_i32 = arith.constant 0 : i32
    %c0_i32_0 = arith.constant 0 : i32
    %c0_i32_1 = arith.constant 0 : i32
    return %c0_i32, %c0_i32_0 : i32, i32
  }
  func.func @transform_14(%arg0: i32) -> (i32, i32) {
    %c0_i32 = arith.constant 0 : i32
    %c0_i32_0 = arith.constant 0 : i32
    return %arg0, %c0_i32 : i32, i32
  }
}

</mosaic_0001>

<llo_original>
// kernel: tpu_custom_call.1
$region0: #{tpu_custom_call.1}
  #allocation0 [shape = 'u32[]', space=smem, size = 0x4, offset = 0x4, fixed_abs, tag = 'smem constant byte address 0x4 - core index']
  #allocation1 [shape = 'u32[72,128]{1,0:T(1,128)}', space=vmem, size = 0x9000, scoped, tag = 'internal scratch']
  %s0 = inlined_call_operand.vmem [shape: f32[8,128], index: 0, kind: input, shape index: {}]
  %s1 = inlined_call_operand.vmem [shape: f32[8,128], index: 1, kind: input, shape index: {}]
  %s2 = inlined_call_operand.vmem [shape: f32[128,64], index: 2, kind: input, shape index: {}]
  %s3 = inlined_call_operand.vmem [shape: f32[1,64], index: 3, kind: input, shape index: {}]
  %s4 = inlined_call_operand.vmem [shape: f32[64,32], index: 4, kind: input, shape index: {}]
  %s5 = inlined_call_operand.vmem [shape: f32[1,32], index: 5, kind: input, shape index: {}]
  %s6 = inlined_call_operand.vmem [shape: f32[32,16], index: 6, kind: input, shape index: {}]
  %s7 = inlined_call_operand.vmem [shape: f32[1,16], index: 7, kind: input, shape index: {}]
  %s8 = inlined_call_operand.vmem [shape: f32[16,32], index: 8, kind: input, shape index: {}]
  %s9 = inlined_call_operand.vmem [shape: f32[1,32], index: 9, kind: input, shape index: {}]
  %s10 = inlined_call_operand.vmem [shape: f32[32,64], index: 10, kind: input, shape index: {}]
  %s11 = inlined_call_operand.vmem [shape: f32[1,64], index: 11, kind: input, shape index: {}]
  %s12 = inlined_call_operand.vmem [shape: f32[64,128], index: 12, kind: input, shape index: {}]
  %s13 = inlined_call_operand.vmem [shape: f32[1,128], index: 13, kind: input, shape index: {}]
  %s14 = inlined_call_operand.hbm [shape: f32[8,128], index: 14, kind: output, shape index: {}]
  %s15 = sld [smem:[#allocation0]]
  $region66: #{tpu_custom_call.1} parent=0
    _
  %s17 = ssub.s32 1, %s15
  %s18 = scalar_select 0, %s17, %s15
  $region1: #{tpu_custom_call.1} parent=0
    #allocation2 [shape = 'u8[4096]{0}', space=vmem, size = 0x1000, scoped, tag = 'output window, operand 0, single buffered']
    #allocation3 [shape = 's32[1]{0}', space=sflag, size = 0x4, scoped, tag = 'scoped memory for tpu_custom_call.1']
    %19 = vsyncpa [#allocation3], 0
    // Predicated region
    $region2: #{tpu_custom_call.1} parent=1 // pred_check
      _
    $region3: #{tpu_custom_call.1} parent=1 // pred_check_branch
      %21 = sbr.rel (0) target = $region5
    $region4: #{tpu_custom_call.1} parent=1 // pred_region
      _
    $region5: #{tpu_custom_call.1} parent=1 // pred_fallthru
      _
    // Predicated region
    $region6: #{tpu_custom_call.1} parent=1 // pred_check
      _
    $region7: #{tpu_custom_call.1} parent=1 // pred_check_branch
      %23 = sbr.rel (0) target = $region9
    $region8: #{tpu_custom_call.1} parent=1 // pred_region
      _
    $region9: #{tpu_custom_call.1} parent=1 // pred_fallthru
      _
    // Predicated region
    $region10: #{tpu_custom_call.1} parent=1 // pred_check
      _
    $region11: #{tpu_custom_call.1} parent=1 // pred_check_branch
      %25 = sbr.rel (0) target = $region13
    $region12: #{tpu_custom_call.1} parent=1 // pred_region
      _
    $region13: #{tpu_custom_call.1} parent=1 // pred_fallthru
      _
    // Predicated region
    $region14: #{tpu_custom_call.1} parent=1 // pred_check
      _
    $region15: #{tpu_custom_call.1} parent=1 // pred_check_branch
      %27 = sbr.rel (0) target = $region17
    $region16: #{tpu_custom_call.1} parent=1 // pred_region
      _
    $region17: #{tpu_custom_call.1} parent=1 // pred_fallthru
      _
    // Predicated region
    $region18: #{tpu_custom_call.1} parent=1 // pred_check
      _
    $region19: #{tpu_custom_call.1} parent=1 // pred_check_branch
      %29 = sbr.rel (0) target = $region21
    $region20: #{tpu_custom_call.1} parent=1 // pred_region
      _
    $region21: #{tpu_custom_call.1} parent=1 // pred_fallthru
      _
    // Predicated region
    $region22: #{tpu_custom_call.1} parent=1 // pred_check
      _
    $region23: #{tpu_custom_call.1} parent=1 // pred_check_branch
      %31 = sbr.rel (0) target = $region25
    $region24: #{tpu_custom_call.1} parent=1 // pred_region
      _
    $region25: #{tpu_custom_call.1} parent=1 // pred_fallthru
      _
    // Predicated region
    $region26: #{tpu_custom_call.1} parent=1 // pred_check
      _
    $region27: #{tpu_custom_call.1} parent=1 // pred_check_branch
      %33 = sbr.rel (0) target = $region29
    $region28: #{tpu_custom_call.1} parent=1 // pred_region
      _
    $region29: #{tpu_custom_call.1} parent=1 // pred_fallthru
      _
    // Predicated region
    $region30: #{tpu_custom_call.1} parent=1 // pred_check
      _
    $region31: #{tpu_custom_call.1} parent=1 // pred_check_branch
      %35 = sbr.rel (0) target = $region33
    $region32: #{tpu_custom_call.1} parent=1 // pred_region
      _
    $region33: #{tpu_custom_call.1} parent=1 // pred_fallthru
      _
    // Predicated region
    $region34: #{tpu_custom_call.1} parent=1 // pred_check
      _
    $region35: #{tpu_custom_call.1} parent=1 // pred_check_branch
      %37 = sbr.rel (0) target = $region37
    $region36: #{tpu_custom_call.1} parent=1 // pred_region
      _
    $region37: #{tpu_custom_call.1} parent=1 // pred_fallthru
      _
    // Predicated region
    $region38: #{tpu_custom_call.1} parent=1 // pred_check
      _
    $region39: #{tpu_custom_call.1} parent=1 // pred_check_branch
      %39 = sbr.rel (0) target = $region41
    $region40: #{tpu_custom_call.1} parent=1 // pred_region
      _
    $region41: #{tpu_custom_call.1} parent=1 // pred_fallthru
      _
    // Predicated region
    $region42: #{tpu_custom_call.1} parent=1 // pred_check
      _
    $region43: #{tpu_custom_call.1} parent=1 // pred_check_branch
      %41 = sbr.rel (0) target = $region45
    $region44: #{tpu_custom_call.1} parent=1 // pred_region
      _
    $region45: #{tpu_custom_call.1} parent=1 // pred_fallthru
      _
    // Predicated region
    $region46: #{tpu_custom_call.1} parent=1 // pred_check
      _
    $region47: #{tpu_custom_call.1} parent=1 // pred_check_branch
      %43 = sbr.rel (0) target = $region49
    $region48: #{tpu_custom_call.1} parent=1 // pred_region
      _
    $region49: #{tpu_custom_call.1} parent=1 // pred_fallthru
      _
    // Predicated region
    $region50: #{tpu_custom_call.1} parent=1 // pred_check
      _
    $region51: #{tpu_custom_call.1} parent=1 // pred_check_branch
      %45 = sbr.rel (0) target = $region53
    $region52: #{tpu_custom_call.1} parent=1 // pred_region
      _
    $region53: #{tpu_custom_call.1} parent=1 // pred_fallthru
      _
    // Predicated region
    $region54: #{tpu_custom_call.1} parent=1 // pred_check
      _
    $region55: #{tpu_custom_call.1} parent=1 // pred_check_branch
      %47 = sbr.rel (0) target = $region57
    $region56: #{tpu_custom_call.1} parent=1 // pred_region
      _
    $region57: #{tpu_custom_call.1} parent=1 // pred_fallthru
      _
    %v48 = vld [vmem:[%s0] sm:$0xff]
    %v49 = vld [vmem:[%s1] sm:$0xff]
    %v50 = vadd.f32 %v48, %v49
    %v51 = vld [vmem:[%s2] sm:$0xff]
    %v52 = vld [vmem:[%s2 + $0x8] sm:$0xff]
    %v53 = vld [vmem:[%s2 + $0x10] sm:$0xff]
    %v54 = vld [vmem:[%s2 + $0x18] sm:$0xff]
    %v55 = vld [vmem:[%s2 + $0x20] sm:$0xff]
    %v56 = vld [vmem:[%s2 + $0x28] sm:$0xff]
    %v57 = vld [vmem:[%s2 + $0x30] sm:$0xff]
    %v58 = vld [vmem:[%s2 + $0x38] sm:$0xff]
    %v59 = vld [vmem:[%s2 + $0x40] sm:$0xff]
    %v60 = vld [vmem:[%s2 + $0x48] sm:$0xff]
    %v61 = vld [vmem:[%s2 + $0x50] sm:$0xff]
    %v62 = vld [vmem:[%s2 + $0x58] sm:$0xff]
    %v63 = vld [vmem:[%s2 + $0x60] sm:$0xff]
    %v64 = vld [vmem:[%s2 + $0x68] sm:$0xff]
    %v65 = vld [vmem:[%s2 + $0x70] sm:$0xff]
    %v66 = vld [vmem:[%s2 + $0x78] sm:$0xff]
    %v67 = vld [vmem:[%s3] sm:$0x1]
    %v69 = vperm.slane %v67, 0
    %71 = vmatpush.msra.mxu0 %v66
    %72 = vmatpush.msra.mxu0 %v65
    %73 = vmatpush.msra.mxu0 %v64
    %74 = vmatpush.msra.mxu0 %v63
    %75 = vmatpush.msra.mxu0 %v62
    %76 = vmatpush.msra.mxu0 %v61
    %77 = vmatpush.msra.mxu0 %v60
    %78 = vmatpush.msra.mxu0 %v59
    %79 = vmatpush.msra.mxu0 %v58
    %80 = vmatpush.msra.mxu0 %v57
    %81 = vmatpush.msra.mxu0 %v56
    %82 = vmatpush.msra.mxu0 %v55
    %83 = vmatpush.msra.mxu0 %v54
    %84 = vmatpush.msra.mxu0 %v53
    %85 = vmatpush.msra.mxu0 %v52
    %86 = vmatpush.msra.mxu0 %v51
    %87 = vmatmul.f32.gmra.mxu0 %v50
    %v88 = vpop.f32.mrf.mxu0
    %v89 = vadd.f32 %v69, %v88
    %90 = vdwg.mxu0
    %v91 = vtanh.pop %v89
    %v92 = vld [vmem:[%s4] sm:$0xff]
    %v93 = vld [vmem:[%s4 + $0x8] sm:$0xff]
    %v94 = vld [vmem:[%s4 + $0x10] sm:$0xff]
    %v95 = vld [vmem:[%s4 + $0x18] sm:$0xff]
    %v96 = vld [vmem:[%s4 + $0x20] sm:$0xff]
    %v97 = vld [vmem:[%s4 + $0x28] sm:$0xff]
    %v98 = vld [vmem:[%s4 + $0x30] sm:$0xff]
    %v99 = vld [vmem:[%s4 + $0x38] sm:$0xff]
    %v100 = vld [vmem:[%s5] sm:$0x1]
    %v102 = vperm.slane %v100, 0
    %vm104 = vcmask 523264
    %v106 = vsel %vm104, %v91, 0
    %108 = vmatpush.msra.mxu0 0.0
    %109 = vmatpush.msra.mxu0 0.0
    %110 = vmatpush.msra.mxu0 0.0
    %111 = vmatpush.msra.mxu0 0.0
    %112 = vmatpush.msra.mxu0 0.0
    %113 = vmatpush.msra.mxu0 0.0
    %114 = vmatpush.msra.mxu0 0.0
    %115 = vmatpush.msra.mxu0 0.0
    %116 = vmatpush.msra.mxu0 %v99
    %117 = vmatpush.msra.mxu0 %v98
    %118 = vmatpush.msra.mxu0 %v97
    %119 = vmatpush.msra.mxu0 %v96
    %120 = vmatpush.msra.mxu0 %v95
    %121 = vmatpush.msra.mxu0 %v94
    %122 = vmatpush.msra.mxu0 %v93
    %123 = vmatpush.msra.mxu0 %v92
    %124 = vmatmul.f32.gmra.mxu0 %v106
    %v125 = vpop.f32.mrf.mxu0
    %v126 = vadd.f32 %v102, %v125
    %127 = vdwg.mxu0
    %v128 = vld [vmem:[%s6] sm:$0xff]
    %v129 = vld [vmem:[%s6 + $0x8] sm:$0xff]
    %v130 = vld [vmem:[%s6 + $0x10] sm:$0xff]
    %v131 = vld [vmem:[%s6 + $0x18] sm:$0xff]
    %v132 = vld [vmem:[%s7] sm:$0x1]
    %v134 = vperm.slane %v132, 0
    %vm136 = vcmask 261120
    %v138 = vsel %vm136, %v126, 0
    %140 = vmatpush.msra.mxu0 0.0
    %141 = vmatpush.msra.mxu0 0.0
    %142 = vmatpush.msra.mxu0 0.0
    %143 = vmatpush.msra.mxu0 0.0
    %144 = vmatpush.msra.mxu0 0.0
    %145 = vmatpush.msra.mxu0 0.0
    %146 = vmatpush.msra.mxu0 0.0
    %147 = vmatpush.msra.mxu0 0.0
    %148 = vmatpush.msra.mxu0 0.0
    %149 = vmatpush.msra.mxu0 0.0
    %150 = vmatpush.msra.mxu0 0.0
    %151 = vmatpush.msra.mxu0 0.0
    %152 = vmatpush.msra.mxu0 %v131
    %153 = vmatpush.msra.mxu0 %v130
    %154 = vmatpush.msra.mxu0 %v129
    %155 = vmatpush.msra.mxu0 %v128
    %156 = vmatmul.f32.gmra.mxu0 %v138
    %v157 = vpop.f32.mrf.mxu0
    %v158 = vadd.f32 %v134, %v157
    %159 = vdwg.mxu0
    %v160 = vsub.f32 0.0, %v158
    %v161 = vmul.f32 %v160, 1.442695
    %v162 = vpow.pop %v161
    %v163 = vadd.f32 %v162, 1.0
    %v164 = vrcp.pop %v163
    %v165 = vld [vmem:[%s8] sm:$0xff]
    %v166 = vld [vmem:[%s8 + $0x8] sm:$0xff]
    %v167 = vld [vmem:[%s9] sm:$0x1]
    %v169 = vperm.slane %v167, 0
    %vm171 = vcmask 130048
    %v173 = vsel %vm171, %v164, 0
    %175 = vmatpush.msra.mxu0 0.0
    %176 = vmatpush.msra.mxu0 0.0
    %177 = vmatpush.msra.mxu0 0.0
    %178 = vmatpush.msra.mxu0 0.0
    %179 = vmatpush.msra.mxu0 0.0
    %180 = vmatpush.msra.mxu0 0.0
    %181 = vmatpush.msra.mxu0 0.0
    %182 = vmatpush.msra.mxu0 0.0
    %183 = vmatpush.msra.mxu0 0.0
    %184 = vmatpush.msra.mxu0 0.0
    %185 = vmatpush.msra.mxu0 0.0
    %186 = vmatpush.msra.mxu0 0.0
    %187 = vmatpush.msra.mxu0 0.0
    %188 = vmatpush.msra.mxu0 0.0
    %189 = vmatpush.msra.mxu0 %v166
    %190 = vmatpush.msra.mxu0 %v165
    %191 = vmatmul.f32.gmra.mxu0 %v173
    %v192 = vpop.f32.mrf.mxu0
    %v193 = vadd.f32 %v169, %v192
    %194 = vdwg.mxu0
    %v195 = vld [vmem:[%s10] sm:$0xff]
    %v196 = vld [vmem:[%s10 + $0x8] sm:$0xff]
    %v197 = vld [vmem:[%s10 + $0x10] sm:$0xff]
    %v198 = vld [vmem:[%s10 + $0x18] sm:$0xff]
    %v199 = vld [vmem:[%s11] sm:$0x1]
    %v201 = vperm.slane %v199, 0
    %v204 = vsel %vm136, %v193, 0
    %206 = vmatpush.msra.mxu0 0.0
    %207 = vmatpush.msra.mxu0 0.0
    %208 = vmatpush.msra.mxu0 0.0
    %209 = vmatpush.msra.mxu0 0.0
    %210 = vmatpush.msra.mxu0 0.0
    %211 = vmatpush.msra.mxu0 0.0
    %212 = vmatpush.msra.mxu0 0.0
    %213 = vmatpush.msra.mxu0 0.0
    %214 = vmatpush.msra.mxu0 0.0
    %215 = vmatpush.msra.mxu0 0.0
    %216 = vmatpush.msra.mxu0 0.0
    %217 = vmatpush.msra.mxu0 0.0
    %218 = vmatpush.msra.mxu0 %v198
    %219 = vmatpush.msra.mxu0 %v197
    %220 = vmatpush.msra.mxu0 %v196
    %221 = vmatpush.msra.mxu0 %v195
    %222 = vmatmul.f32.gmra.mxu0 %v204
    %v223 = vpop.f32.mrf.mxu0
    %v224 = vadd.f32 %v201, %v223
    %225 = vdwg.mxu0
    %v226 = vld [vmem:[%s12] sm:$0xff]
    %v227 = vld [vmem:[%s12 + $0x8] sm:$0xff]
    %v228 = vld [vmem:[%s12 + $0x10] sm:$0xff]
    %v229 = vld [vmem:[%s12 + $0x18] sm:$0xff]
    %v230 = vld [vmem:[%s12 + $0x20] sm:$0xff]
    %v231 = vld [vmem:[%s12 + $0x28] sm:$0xff]
    %v232 = vld [vmem:[%s12 + $0x30] sm:$0xff]
    %v233 = vld [vmem:[%s12 + $0x38] sm:$0xff]
    %v234 = vld [vmem:[%s13] sm:$0x1]
    %v236 = vperm.slane %v234, 0
    %v239 = vsel %vm104, %v224, 0
    %241 = vmatpush.msra.mxu0 0.0
    %242 = vmatpush.msra.mxu0 0.0
    %243 = vmatpush.msra.mxu0 0.0
    %244 = vmatpush.msra.mxu0 0.0
    %245 = vmatpush.msra.mxu0 0.0
    %246 = vmatpush.msra.mxu0 0.0
    %247 = vmatpush.msra.mxu0 0.0
    %248 = vmatpush.msra.mxu0 0.0
    %249 = vmatpush.msra.mxu0 %v233
    %250 = vmatpush.msra.mxu0 %v232
    %251 = vmatpush.msra.mxu0 %v231
    %252 = vmatpush.msra.mxu0 %v230
    %253 = vmatpush.msra.mxu0 %v229
    %254 = vmatpush.msra.mxu0 %v228
    %255 = vmatpush.msra.mxu0 %v227
    %256 = vmatpush.msra.mxu0 %v226
    %257 = vmatmul.f32.gmra.mxu0 %v239
    %v258 = vpop.f32.mrf.mxu0
    %v259 = vadd.f32 %v236, %v258
    %260 = vdwg.mxu0
    %v261 = vsub.f32 0.0, %v259
    %v262 = vmul.f32 %v261, 1.442695
    %v263 = vpow.pop %v262
    %v264 = vadd.f32 %v263, 1.0
    %v265 = vrcp.pop %v264
    %266 = vst [vmem:[#allocation2] sm:$0xff] %v265
    // Predicated region
    $region58: #{tpu_custom_call.1} parent=1 // pred_check
      _
    $region59: #{tpu_custom_call.1} parent=1 // pred_check_branch
      %268 = sbr.rel (0) target = $region61
    $region60: #{tpu_custom_call.1} parent=1 // pred_region
      %270 = vsyncadd [#allocation3], 0
      %s272 = sshll.u32 [#allocation2], 4
      %s273 = int_to_ptr.vmem [resolvable:$true] %s272
      %s274 = sshll.u32 %s14, 4
      %s275 = int_to_ptr.hbm [resolvable:$true] %s274
      %277 = dma.vmem_to_hbm [thread:$0]  %s273, 128, %s275, [#allocation3]
    $region61: #{tpu_custom_call.1} parent=1 // pred_fallthru
      _
    // Predicated region
    $region62: #{tpu_custom_call.1} parent=1 // pred_check
      _
    $region63: #{tpu_custom_call.1} parent=1 // pred_check_branch
      %279 = sbr.rel (0) target = $region65
    $region64: #{tpu_custom_call.1} parent=1 // pred_region
      %281 = dma.done [#allocation3], 128
    $region65: #{tpu_custom_call.1} parent=1 // pred_fallthru
      _
    %282 = vsyncpa [#allocation3], 1

</llo_original>
